<compile_context>
chip_gen: v7x
topology: tpu7x:2x2x1
jax: 0.10.0
libtpu: 0.0.40
codegen_flags: <defaults>
</compile_context>

<pallas_src>
import functools
import math

import jax
import jax.numpy as jnp
from jax.experimental import pallas as pl
from jax.experimental.pallas import tpu as pltpu


def _label_smoothing_kernel(x_ref, t_ref, o_ref, row_acc_ref, *,
                            padding_idx, smooth_val, confidence, row_const,
                            n_rows, vocab_size, steps_per_chunk, tile_n, tile_v,
                            mask_ragged_rows, mask_ragged_cols):
    p = pl.program_id(0)
    s = pl.program_id(1)
    v = pl.program_id(2)

    # Reset the per-chunk row accumulator at the start of each chunk.
    @pl.when(jnp.logical_and(s == 0, v == 0))
    def _():
        row_acc_ref[...] = jnp.zeros_like(row_acc_ref)

    x = x_ref[...].astype(jnp.float32)            # (tile_n, tile_v) log-probs
    tgt = t_ref[...]                              # (tile_n, 1) int32 targets

    # Global column index for this vocab tile.
    cols = v * tile_v + jax.lax.broadcasted_iota(
        jnp.int32, (tile_n, tile_v), dimension=1)

    # Elementwise smoothed-target values {confidence, smooth_val, 0}.
    t_vals = jnp.where(cols == tgt, jnp.float32(confidence),
                       jnp.float32(smooth_val))
    t_vals = jnp.where(cols == padding_idx, jnp.float32(0.0), t_vals)

    contrib = t_vals * x
    if mask_ragged_cols:                          # ragged vocab tail (select -> NaN safe)
        contrib = jnp.where(cols < vocab_size, contrib, jnp.float32(0.0))

    partial = jnp.sum(contrib, axis=-1, keepdims=True)   # (tile_n, 1)

    # Row validity: padding rows always masked; ragged row tail masked by global index.
    valid = tgt != padding_idx
    if mask_ragged_rows:
        rows = (p * steps_per_chunk + s) * tile_n + jax.lax.broadcasted_iota(
            jnp.int32, (tile_n, 1), dimension=0)
        valid = jnp.logical_and(valid, rows < n_rows)

    # row_kl = row_const - sum_over_all_vocab_tiles(partial); add row_const once
    # (on the first vocab tile) and subtract each partial, all in one RMW.
    head = jnp.where(v == 0, jnp.float32(row_const), jnp.float32(0.0))
    row_acc_ref[...] += jnp.where(valid, head - partial, jnp.float32(0.0))

    # Full reduce + lane-dense store only once per chunk.
    @pl.when(jnp.logical_and(s == pl.num_programs(1) - 1,
                             v == pl.num_programs(2) - 1))
    def _():
        total = jnp.sum(row_acc_ref[...])
        o_ref[...] = jnp.full(o_ref.shape, total, dtype=jnp.float32)


def _round_up(a, b):
    return ((a + b - 1) // b) * b


def _vmem_capacity_bytes():
    """Physical VMEM of the current chip; conservative fallback (v7x = 64 MiB)."""
    try:
        info = pltpu.get_tpu_info()
        cap = int(getattr(info, "vmem_capacity_bytes", 0) or 0)
        if cap > 0:
            return cap
    except Exception:
        pass
    return 64 * 1024 * 1024


def label_smoothing_loss(x, target, *, size, padding_idx, smoothing,
                         tile_n=None, tile_v=None):
    """x: (N, V) f32/bf16 log-probs; target: (N,) int ids. Returns scalar f32 loss."""
    N, V = x.shape
    assert V == size
    assert size > 2, "smoothing/(size-2) requires size > 2"
    confidence = 1.0 - smoothing
    smooth_val = smoothing / (size - 2)

    # Entropy term folded to a per-(non-pad)-row constant (0*log(0) := 0).
    row_const = 0.0
    if confidence > 0.0:
        row_const += confidence * math.log(confidence)
    if smooth_val > 0.0:
        row_const += (size - 2) * smooth_val * math.log(smooth_val)

    itemsize = x.dtype.itemsize
    mult = max(8, 32 // itemsize)                 # sublane multiple: f32=8, bf16=16, 8-bit=32

    cap = _vmem_capacity_bytes()
    # Per-buffer x tile target: big enough to sit at the HBM roofline, small enough
    # to leave VMEM headroom for double-buffering + elementwise temporaries.
    tile_target = min(max(cap // 8, 4 << 20), 12 << 20)
    vmem_limit = int(cap * 3 // 4)

    # --- vocab (lane) tiling -------------------------------------------------
    if tile_v is None:
        if V * itemsize * mult <= tile_target:
            tile_v = V                             # no vocab tiling needed
        else:
            rows_hint = _round_up(256, mult)
            tile_v = max(128, (tile_target // (rows_hint * itemsize)) // 128 * 128)
            tile_v = min(tile_v, _round_up(V, 128))
    if tile_v >= V:
        tile_v = V
    else:
        assert tile_v % 128 == 0, "partial vocab tiles must be lane multiples of 128"
    num_v = -(-V // tile_v)

    # --- row tiling ----------------------------------------------------------
    if tile_n is None:
        rows = tile_target // (tile_v * itemsize)
        tile_n = max(mult, (rows // mult) * mult)
        tile_n = min(tile_n, _round_up(N, mult))
    assert tile_n % mult == 0 and tile_n > 0

    total_steps = -(-N // tile_n)
    # Outer 'parallel' chunk axis (dual-TC on v7x); only when it divides evenly so
    # no block index falls fully outside the (un-padded) input.
    P = 2 if (total_steps >= 2 and total_steps % 2 == 0) else 1
    S = total_steps // P

    tgt2d = target.astype(jnp.int32).reshape(N, 1)   # tiny; no padding of x at all

    kernel = functools.partial(
        _label_smoothing_kernel,
        padding_idx=padding_idx, smooth_val=smooth_val, confidence=confidence,
        row_const=row_const, n_rows=N, vocab_size=V, steps_per_chunk=S,
        tile_n=tile_n, tile_v=tile_v,
        mask_ragged_rows=(total_steps * tile_n != N),
        mask_ragged_cols=(num_v * tile_v != V))

    out = pl.pallas_call(
        kernel,
        out_shape=jax.ShapeDtypeStruct((P, 8, 128), jnp.float32),
        grid_spec=pltpu.PrefetchScalarGridSpec(
            num_scalar_prefetch=0,
            grid=(P, S, num_v),
            in_specs=[
                pl.BlockSpec((tile_n, tile_v), lambda p, s, v: (p * S + s, v)),
                pl.BlockSpec((tile_n, 1), lambda p, s, v: (p * S + s, 0)),
            ],
            out_specs=pl.BlockSpec((1, 8, 128), lambda p, s, v: (p, 0, 0)),
            scratch_shapes=[pltpu.VMEM((tile_n, 1), jnp.float32)],
        ),
        compiler_params=pltpu.CompilerParams(
            dimension_semantics=("parallel", "arbitrary", "arbitrary"),
            vmem_limit_bytes=vmem_limit),
    )(x, tgt2d)

    # Each chunk broadcast-stored its partial sum into its (8,128) output block.
    return jnp.sum(out[:, 0, 0])


def _reference_loss(x, target, *, size, padding_idx, smoothing):
    """Pure-JAX reference mirroring the PyTorch module semantics."""
    confidence = 1.0 - smoothing
    N, V = x.shape
    true_dist = jnp.full((N, V), smoothing / (size - 2), jnp.float32)
    true_dist = true_dist.at[jnp.arange(N), target].set(confidence)
    true_dist = true_dist.at[:, padding_idx].set(0.0)
    true_dist = jnp.where((target == padding_idx)[:, None], 0.0, true_dist)
    safe_t = jnp.where(true_dist > 0, true_dist, 1.0)
    return jnp.sum(jnp.where(true_dist > 0,
                             true_dist * (jnp.log(safe_t) - x), 0.0))


if __name__ == "__main__":
    # TODO(synk): the PyTorch module also stashes `self.true_dist` as a side effect;
    # only the scalar loss (the forward return value) is produced here.
    key = jax.random.PRNGKey(0)
    padding_idx = 0
    smoothing = 0.1

    # --- Test 1: f32, forced tiny row tile -> ragged row tail + 2-chunk parallel
    # axis + multi-step inner reduction. -------------------------------------
    N, V = 28, 32
    k1, k2 = jax.random.split(key)
    logits = jax.random.normal(k1, (N, V), dtype=jnp.float32)
    x = jax.nn.log_softmax(logits, axis=-1)
    target = jax.random.randint(k2, (N,), 0, V, dtype=jnp.int32)
    target = target.at[3].set(padding_idx)     # exercise the row-masking path

    ref = _reference_loss(x, target, size=V, padding_idx=padding_idx,
                          smoothing=smoothing)
    loss_small = label_smoothing_loss(x, target, size=V, padding_idx=padding_idx,
                                      smoothing=smoothing, tile_n=8)
    loss_small = jax.block_until_ready(loss_small)
    assert jnp.allclose(loss_small, ref, rtol=1e-5, atol=1e-5), (loss_small, ref)

    # --- Test 2: auto tile selection (what production shapes would use). -----
    loss_auto = label_smoothing_loss(x, target, size=V, padding_idx=padding_idx,
                                     smoothing=smoothing)
    loss_auto = jax.block_until_ready(loss_auto)
    assert jnp.allclose(loss_auto, ref, rtol=1e-5, atol=1e-5), (loss_auto, ref)

    # --- Test 3: bf16 input + vocab tiling with a ragged vocab tail. ---------
    N2, V2 = 20, 300
    k3, k4 = jax.random.split(k2)
    logits2 = jax.random.normal(k3, (N2, V2), dtype=jnp.float32)
    x2 = jax.nn.log_softmax(logits2, axis=-1).astype(jnp.bfloat16)
    target2 = jax.random.randint(k4, (N2,), 0, V2, dtype=jnp.int32)
    target2 = target2.at[0].set(padding_idx)
    ref2 = _reference_loss(x2.astype(jnp.float32), target2, size=V2,
                           padding_idx=padding_idx, smoothing=smoothing)
    loss_bf16 = label_smoothing_loss(x2, target2, size=V2, padding_idx=padding_idx,
                                     smoothing=smoothing, tile_n=16, tile_v=128)
    loss_bf16 = jax.block_until_ready(loss_bf16)
    assert jnp.allclose(loss_bf16, ref2, rtol=1e-4, atol=1e-4), (loss_bf16, ref2)

    print("KERNEL_OK")
</pallas_src>

<mosaic_0001>
module attributes {stable_mosaic.version = 11 : i64} {
  func.func @_label_smoothing_kernel(%arg0: i32, %arg1: i32, %arg2: i32, %arg3: memref<8x32xf32, #tpu.memory_space<vmem>>, %arg4: memref<8x1xi32, #tpu.memory_space<vmem>>, %arg5: memref<1x8x128xf32, #tpu.memory_space<vmem>>, %arg6: memref<8x1xf32, #tpu.memory_space<vmem>>) attributes {dimension_semantics = [#tpu.dimension_semantics<parallel>, #tpu.dimension_semantics<arbitrary>, #tpu.dimension_semantics<arbitrary>], iteration_bounds = array<i64: 2, 2, 1>, scalar_prefetch = 0 : i64, scratch_operands = 1 : i64, tpu.core_type = #tpu.core_type<tc>, window_params = [{transform_indices = @transform_0, window_bounds = array<i64: 8, 32>}, {transform_indices = @transform_1, window_bounds = array<i64: 8, 1>}, {transform_indices = @transform_2, window_bounds = array<i64: 1, 8, 128>}]} {
    %c0_i32 = arith.constant 0 : i32
    %0 = arith.cmpi eq, %arg1, %c0_i32 : i32
    %c0_i32_0 = arith.constant 0 : i32
    %1 = arith.cmpi eq, %arg2, %c0_i32_0 : i32
    %2 = arith.andi %0, %1 : i1
    %3 = arith.extui %2 : i1 to i32
    %c0_i32_1 = arith.constant 0 : i32
    %4 = arith.cmpi ne, %3, %c0_i32_1 : i32
    scf.if %4 {
      %cst_20 = arith.constant 0.000000e+00 : f32
      %48 = vector.broadcast %cst_20 : f32 to vector<8x1xf32>
      %c0_21 = arith.constant 0 : index
      %c0_22 = arith.constant 0 : index
      %49 = vector.load %arg6[%c0_21, %c0_22] : memref<8x1xf32, #tpu.memory_space<vmem>>, vector<8x1xf32>
      tpu.vector_store %arg6[%c0_21, %c0_22], %48 {strides = array<i32>} : memref<8x1xf32, #tpu.memory_space<vmem>>, vector<8x1xf32>,
    } else {
    }
    %c0 = arith.constant 0 : index
    %c0_2 = arith.constant 0 : index
    %5 = vector.load %arg3[%c0, %c0_2] : memref<8x32xf32, #tpu.memory_space<vmem>>, vector<8x32xf32>
    %c0_3 = arith.constant 0 : index
    %c0_4 = arith.constant 0 : index
    %6 = vector.load %arg4[%c0_3, %c0_4] : memref<8x1xi32, #tpu.memory_space<vmem>>, vector<8x1xi32>
    %c32_i32 = arith.constant 32 : i32
    %7 = arith.muli %arg2, %c32_i32 : i32
    %8 = tpu.iota {dimensions = array<i32: 1>} : vector<8x32xi32>
    %9 = vector.broadcast %7 : i32 to vector<8x32xi32>
    %10 = arith.addi %9, %8 : vector<8x32xi32>
    %11 = vector.broadcast %6 : vector<8x1xi32> to vector<8x32xi32>
    %12 = arith.cmpi eq, %10, %11 : vector<8x32xi32>
    %cst = arith.constant 0.899999976 : f32
    %cst_5 = arith.constant 0.00333333341 : f32
    %13 = vector.broadcast %cst : f32 to vector<8x32xf32>
    %14 = vector.broadcast %cst_5 : f32 to vector<8x32xf32>
    %15 = arith.select %12, %13, %14 : vector<8x32xi1>, vector<8x32xf32>
    %c0_i32_6 = arith.constant 0 : i32
    %16 = vector.broadcast %c0_i32_6 : i32 to vector<8x32xi32>
    %17 = arith.cmpi eq, %10, %16 : vector<8x32xi32>
    %cst_7 = arith.constant 0.000000e+00 : f32
    %18 = vector.broadcast %cst_7 : f32 to vector<8x32xf32>
    %19 = arith.select %17, %18, %15 : vector<8x32xi1>, vector<8x32xf32>
    %20 = arith.mulf %19, %5 : vector<8x32xf32>
    %cst_8 = arith.constant dense<0.000000e+00> : vector<8xf32>
    %21 = vector.multi_reduction <add>, %20, %cst_8 [1] : vector<8x32xf32> to vector<8xf32>
    %22 = vector.shape_cast %21 : vector<8xf32> to vector<8x1xf32>
    %c0_i32_9 = arith.constant 0 : i32
    %23 = vector.broadcast %c0_i32_9 : i32 to vector<8x1xi32>
    %24 = arith.cmpi ne, %6, %23 : vector<8x1xi32>
    %c2_i32 = arith.constant 2 : i32
    %25 = arith.muli %arg0, %c2_i32 : i32
    %26 = arith.addi %25, %arg1 : i32
    %c8_i32 = arith.constant 8 : i32
    %27 = arith.muli %26, %c8_i32 : i32
    %28 = tpu.iota {dimensions = array<i32: 0>} : vector<8x1xi32>
    %29 = vector.broadcast %27 : i32 to vector<8x1xi32>
    %30 = arith.addi %29, %28 : vector<8x1xi32>
    %c28_i32 = arith.constant 28 : i32
    %31 = vector.broadcast %c28_i32 : i32 to vector<8x1xi32>
    %32 = arith.cmpi slt, %30, %31 : vector<8x1xi32>
    %33 = arith.andi %24, %32 : vector<8x1xi1>
    %c0_i32_10 = arith.constant 0 : i32
    %34 = arith.cmpi eq, %arg2, %c0_i32_10 : i32
    %cst_11 = arith.constant -0.665202737 : f32
    %cst_12 = arith.constant 0.000000e+00 : f32
    %35 = arith.select %34, %cst_11, %cst_12 : f32
    %c0_13 = arith.constant 0 : index
    %c0_14 = arith.constant 0 : index
    %36 = vector.load %arg6[%c0_13, %c0_14] : memref<8x1xf32, #tpu.memory_space<vmem>>, vector<8x1xf32>
    %37 = vector.broadcast %35 : f32 to vector<8x1xf32>
    %38 = arith.subf %37, %22 : vector<8x1xf32>
    %cst_15 = arith.constant 0.000000e+00 : f32
    %39 = vector.broadcast %cst_15 : f32 to vector<8x1xf32>
    %40 = arith.select %33, %38, %39 : vector<8x1xi1>, vector<8x1xf32>
    %41 = arith.addf %36, %40 : vector<8x1xf32>
    %c0_16 = arith.constant 0 : index
    %c0_17 = arith.constant 0 : index
    %42 = vector.load %arg6[%c0_16, %c0_17] : memref<8x1xf32, #tpu.memory_space<vmem>>, vector<8x1xf32>
    tpu.vector_store %arg6[%c0_16, %c0_17], %41 {strides = array<i32>} : memref<8x1xf32, #tpu.memory_space<vmem>>, vector<8x1xf32>,
    %c1_i32 = arith.constant 1 : i32
    %43 = arith.cmpi eq, %arg1, %c1_i32 : i32
    %c0_i32_18 = arith.constant 0 : i32
    %44 = arith.cmpi eq, %arg2, %c0_i32_18 : i32
    %45 = arith.andi %43, %44 : i1
    %46 = arith.extui %45 : i1 to i32
    %c0_i32_19 = arith.constant 0 : i32
    %47 = arith.cmpi ne, %46, %c0_i32_19 : i32
    scf.if %47 {
      %c0_20 = arith.constant 0 : index
      %c0_21 = arith.constant 0 : index
      %48 = vector.load %arg6[%c0_20, %c0_21] : memref<8x1xf32, #tpu.memory_space<vmem>>, vector<8x1xf32>
      %49 = vector.shape_cast %48 : vector<8x1xf32> to vector<1x8x1xf32>
      %cst_22 = arith.constant dense<0.000000e+00> : vector<1xf32>
      %50 = vector.multi_reduction <add>, %49, %cst_22 [1, 2] : vector<1x8x1xf32> to vector<1xf32>
      %51 = vector.shape_cast %50 : vector<1xf32> to vector<1x1x1xf32>
      %52 = vector.extract %51[0, 0, 0] : f32 from vector<1x1x1xf32>
      %53 = vector.broadcast %52 : f32 to vector<1x8x128xf32>
      %c0_23 = arith.constant 0 : index
      %c0_24 = arith.constant 0 : index
      %c0_25 = arith.constant 0 : index
      %54 = vector.load %arg5[%c0_23, %c0_24, %c0_25] : memref<1x8x128xf32, #tpu.memory_space<vmem>>, vector<1x8x128xf32>
      tpu.vector_store %arg5[%c0_23, %c0_24, %c0_25], %53 {strides = array<i32>} : memref<1x8x128xf32, #tpu.memory_space<vmem>>, vector<1x8x128xf32>,
    } else {
    }
    return
  }
  func.func @transform_0(%arg0: i32, %arg1: i32, %arg2: i32) -> (i32, i32) {
    %c2_i32 = arith.constant 2 : i32
    %0 = arith.muli %arg0, %c2_i32 : i32
    %1 = arith.addi %0, %arg1 : i32
    %c0_i32 = arith.constant 0 : i32
    return %1, %arg2 : i32, i32
  }
  func.func @transform_1(%arg0: i32, %arg1: i32, %arg2: i32) -> (i32, i32) {
    %c2_i32 = arith.constant 2 : i32
    %0 = arith.muli %arg0, %c2_i32 : i32
    %1 = arith.addi %0, %arg1 : i32
    %c0_i32 = arith.constant 0 : i32
    %c0_i32_0 = arith.constant 0 : i32
    return %1, %c0_i32 : i32, i32
  }
  func.func @transform_2(%arg0: i32, %arg1: i32, %arg2: i32) -> (i32, i32, i32) {
    %c0_i32 = arith.constant 0 : i32
    %c0_i32_0 = arith.constant 0 : i32
    %c0_i32_1 = arith.constant 0 : i32
    return %arg0, %c0_i32, %c0_i32_0 : i32, i32, i32
  }
}

</mosaic_0001>

<llo_original>
// kernel: tpu_custom_call.1
$region0: #{tpu_custom_call.1}
  #allocation0 [shape = 'u32[]', space=smem, size = 0x4, offset = 0x4, fixed_abs, tag = 'smem constant byte address 0x4 - core index']
  #allocation1 [shape = 'u32[144,128]{1,0:T(1,128)}', space=vmem, size = 0x12000, scoped, tag = 'internal scratch']
  #allocation2 [shape = 'f32[8,1]{1,0:T(8,128)}', space=vmem, size = 0x1000, scoped, tag = 'scratch operand']
  %s0 = inlined_call_operand.vmem [shape: f32[28,32], index: 0, kind: input, shape index: {}]
  %s1 = inlined_call_operand.vmem [shape: s32[28,1], index: 1, kind: input, shape index: {}]
  %s2 = inlined_call_operand.hbm [shape: f32[2,8,128], index: 2, kind: output, shape index: {}]
  %s3 = sld [smem:[#allocation0]]
  $region49: #{tpu_custom_call.1} parent=0
    _
  %s5 = ssub.s32 1, %s3
  %s6 = scalar_select 0, %s5, %s3
  $region1: #{tpu_custom_call.1} parent=0
    #allocation3 [shape = 'u8[8192]{0}', space=vmem, size = 0x2000, scoped, tag = 'output window, operand 0']
    #allocation4 [shape = 's32[2]{0}', space=sflag, size = 0x8, scoped, tag = 'scoped memory for tpu_custom_call.1']
    %7 = vsyncpa [#allocation4], 0
    %s8 = scalar_lea.sflag [#allocation4], 1
    %9 = vsyncpa %s8, 0
    loop: start=0, step=1, limit=6
    $region2: #{tpu_custom_call.1} parent=1 // loop_pre_header
      _
    $region3: #{tpu_custom_call.1} parent=1 // loop_header
      %s11 = sphi 0, %s15
      %p12 = scmp.ge.s32.totalorder %s11, 6
      %s18 = sphi 0, %s37
      %s19 = sphi 0, %s33
      %s20 = sphi 0, %s29
      %s21 = sphi 0, %s18
      %s22 = sphi 0, %s19
      %s23 = sphi 0, %s20
      %s24 = sphi 0, %s21
      %s25 = sphi 0, %s22
      %s26 = sphi 0, %s23
      %s46 = sphi 0, %s48
      %s49 = sphi 0, %s46
      %s50 = sphi 0, %s49
      %s66 = sphi 0, %s50
      %s76 = sphi 0, %s78
      %s79 = sphi 0, %s76
      %s80 = sphi 0, %s79
      %s96 = sphi 0, %s80
      %s102 = sphi 0, %s104
      %s105 = sphi 0, %s102
      %s106 = sphi 0, %s105
      %s122 = sphi 0, %s106
    $region4: #{tpu_custom_call.1} parent=1 // loop_header_branch
      %14 = sbr.rel (%p12) target = $region8
    $region5: #{tpu_custom_call.1} parent=1 // loop_body
      %s16 = ssub.s32 %s11, 1
      %s17 = ssub.s32 %s11, 2
      %s27 = sadd.s32 1, %s20
      %p28 = scmp.ge.s32.totalorder %s27, 1
      %s29 = scalar_select %p28, 0, %s27
      %s30 = sadd.s32 1, %s19
      %s31 = scalar_select %p28, %s30, %s19
      %p32 = scmp.ge.s32.totalorder %s31, 2
      %s33 = scalar_select %p32, 0, %s31
      %s34 = sadd.s32 1, %s18
      %s35 = scalar_select %p32, %s34, %s18
      %p36 = scmp.ge.s32.totalorder %s35, 2
      %s37 = scalar_select %p36, 0, %s35
      %s38 = smul.u32 %s18, 2
      %s39 = sadd.s32 %s38, %s19
      %s40 = smul.u32 %s37, 2
      %s41 = sadd.s32 %s40, %s33
      %s42 = ssub.s32 %s39, %s41
      %s43 = ssub.s32 %s20, %s29
      %s44 = sor.u32 %s42, %s43
      %p45 = scmp.eq.s32.totalorder %s44, 0
      %s47 = sadd.s32 %s46, 1
      %s48 = scalar_select %p45, %s46, %s47
      %p51 = pneg %p45
      %p52 = scmp.eq.s32.totalorder %s11, 3
      %p53 = por %p51, %p52
      %p54 = scmp.ne.s32.totalorder %s46, %s49
      %p55 = scmp.eq.s32.totalorder %s11, 0
      %p56 = por %p54, %p55
      %p57 = scmp.ne.s32.totalorder %s46, %s49
      %p58 = scmp.eq.s32.totalorder %s16, 3
      %p59 = por %p57, %p58
      %p60 = scmp.ne.s32.totalorder %s49, %s50
      %p61 = scmp.eq.s32.totalorder %s16, 0
      %p62 = por %p60, %p61
      %p63 = scmp.ne.s32.totalorder %s49, %s50
      %p64 = scmp.eq.s32.totalorder %s17, 3
      %p65 = por %p63, %p64
      %p67 = scmp.ne.s32.totalorder %s50, %s66
      %p68 = scmp.eq.s32.totalorder %s17, 0
      %p69 = por %p67, %p68
      %s70 = smul.u32 %s18, 2
      %s71 = sadd.s32 %s70, %s19
      %s72 = smul.u32 %s37, 2
      %s73 = sadd.s32 %s72, %s33
      %s74 = ssub.s32 %s71, %s73
      %p75 = scmp.eq.s32.totalorder %s74, 0
      %s77 = sadd.s32 %s76, 1
      %s78 = scalar_select %p75, %s76, %s77
      %p81 = pneg %p75
      %p82 = scmp.eq.s32.totalorder %s11, 3
      %p83 = por %p81, %p82
      %p84 = scmp.ne.s32.totalorder %s76, %s79
      %p85 = scmp.eq.s32.totalorder %s11, 0
      %p86 = por %p84, %p85
      %p87 = scmp.ne.s32.totalorder %s76, %s79
      %p88 = scmp.eq.s32.totalorder %s16, 3
      %p89 = por %p87, %p88
      %p90 = scmp.ne.s32.totalorder %s79, %s80
      %p91 = scmp.eq.s32.totalorder %s16, 0
      %p92 = por %p90, %p91
      %p93 = scmp.ne.s32.totalorder %s79, %s80
      %p94 = scmp.eq.s32.totalorder %s17, 3
      %p95 = por %p93, %p94
      %p97 = scmp.ne.s32.totalorder %s80, %s96
      %p98 = scmp.eq.s32.totalorder %s17, 0
      %p99 = por %p97, %p98
      %s100 = ssub.s32 %s18, %s37
      %p101 = scmp.eq.s32.totalorder %s100, 0
      %s103 = sadd.s32 %s102, 1
      %s104 = scalar_select %p101, %s102, %s103
      %p107 = pneg %p101
      %p108 = scmp.eq.s32.totalorder %s11, 3
      %p109 = por %p107, %p108
      %p110 = scmp.ne.s32.totalorder %s102, %s105
      %p111 = scmp.eq.s32.totalorder %s11, 0
      %p112 = por %p110, %p111
      %p113 = scmp.ne.s32.totalorder %s102, %s105
      %p114 = scmp.eq.s32.totalorder %s16, 3
      %p115 = por %p113, %p114
      %p116 = scmp.ne.s32.totalorder %s105, %s106
      %p117 = scmp.eq.s32.totalorder %s16, 0
      %p118 = por %p116, %p117
      %p119 = scmp.ne.s32.totalorder %s105, %s106
      %p120 = scmp.eq.s32.totalorder %s17, 3
      %p121 = por %p119, %p120
      %p123 = scmp.ne.s32.totalorder %s106, %s122
      %p124 = scmp.eq.s32.totalorder %s17, 0
      %p125 = por %p123, %p124
      %p126 = scmp.le.s32.totalorder 1, %s11
      %p127 = scmp.lt.s32.totalorder %s11, 5
      %p128 = pnand %p126, %p127
      %p129 = pneg %p128
      // Predicated region
      $region9: #{tpu_custom_call.1} parent=5 // pred_check
        _
      $region10: #{tpu_custom_call.1} parent=5 // pred_check_branch
        %131 = sbr.rel (%p128) target = $region12
      $region11: #{tpu_custom_call.1} parent=5 // pred_region
        %s132 = ssub.s32 %s11, 1
      $region12: #{tpu_custom_call.1} parent=5 // pred_fallthru
        _
      %p133 = scmp.lt.s32.totalorder %s11, 4
      // Predicated region
      $region13: #{tpu_custom_call.1} parent=5 // pred_check
        %p134 = pneg %p133
      $region14: #{tpu_custom_call.1} parent=5 // pred_check_branch
        %136 = sbr.rel (%p134) target = $region16
      $region15: #{tpu_custom_call.1} parent=5 // pred_region
        // Predicated region
        $region17: #{tpu_custom_call.1} parent=15 // pred_check
          %p137 = pneg %p56
        $region18: #{tpu_custom_call.1} parent=15 // pred_check_branch
          %139 = sbr.rel (%p137) target = $region20
        $region19: #{tpu_custom_call.1} parent=15 // pred_region
          %s140 = smul.u32 %s18, 2
          %s141 = sadd.s32 %s140, %s19
          %p142 = scmp.lt.s32.totalorder %s141, 3
          %s143 = scalar_select %p142, %s141, 3
          %p144 = scmp.lt.s32.totalorder %s20, 0
          %s145 = scalar_select %p144, %s20, 0
          %s146 = sadd.s32 %s145, %s143
          %s147 = smul.addr %s146, 8
          %s148 = scalar_lea.vmem %s0, %s147
          %s149 = smul.u32 %s18, 2
          %s150 = sadd.s32 %s149, %s19
        $region20: #{tpu_custom_call.1} parent=15 // pred_fallthru
          _
        // Predicated region
        $region21: #{tpu_custom_call.1} parent=15 // pred_check
          %p151 = pneg %p86
        $region22: #{tpu_custom_call.1} parent=15 // pred_check_branch
          %153 = sbr.rel (%p151) target = $region24
        $region23: #{tpu_custom_call.1} parent=15 // pred_region
          %s154 = smul.u32 %s18, 2
          %s155 = sadd.s32 %s154, %s19
          %p156 = scmp.lt.s32.totalorder %s155, 3
          %s157 = scalar_select %p156, %s155, 3
          %s158 = smul.addr %s157, 8
          %s159 = scalar_lea.vmem %s1, %s158
          %s160 = smul.u32 %s18, 2
          %s161 = sadd.s32 %s160, %s19
        $region24: #{tpu_custom_call.1} parent=15 // pred_fallthru
          _
      $region16: #{tpu_custom_call.1} parent=5 // pred_fallthru
        _
      %p162 = scmp.le.s32.totalorder 1, %s11
      %p163 = scmp.lt.s32.totalorder %s11, 5
      %p164 = pnand %p162, %p163
      %p165 = pneg %p164
      // Predicated region
      $region25: #{tpu_custom_call.1} parent=5 // pred_check
        _
      $region26: #{tpu_custom_call.1} parent=5 // pred_check_branch
        %167 = sbr.rel (%p164) target = $region28
      $region27: #{tpu_custom_call.1} parent=5 // pred_region
        %s168 = ssub.s32 %s11, 1
        %s169 = smul.u32 %s21, 2
        %s170 = sadd.s32 %s169, %s22
        %p171 = scmp.lt.s32.totalorder %s170, 3
        %s172 = scalar_select %p171, %s170, 3
        %p173 = scmp.lt.s32.totalorder %s23, 0
        %s174 = scalar_select %p173, %s23, 0
        %s175 = sadd.s32 %s174, %s172
        %s176 = smul.addr %s175, 8
        %s177 = scalar_lea.vmem %s0, %s176
        %p178 = pneg %p62
        %p179 = pneg %p59
        %s180 = smul.u32 %s21, 2
        %s181 = sadd.s32 %s180, %s22
        %p182 = scmp.lt.s32.totalorder %s181, 3
        %s183 = scalar_select %p182, %s181, 3
        %s184 = smul.addr %s183, 8
        %s185 = scalar_lea.vmem %s1, %s184
        %p186 = pneg %p92
        %p187 = pneg %p89
        %p188 = pneg %p118
        %p189 = pneg %p115
        %s190 = sand.u32 %s105, 1
        %s191 = scalar_lea.sflag [#allocation4], %s190
        %s192 = sand.u32 %s105, 1
        %s193 = smul.addr %s192, 8
        %s194 = scalar_lea.vmem [#allocation3], %s193
        %s195 = smul.u32 %s21, 2
        %s196 = sadd.s32 %s195, %s22
        %p197 = scmp.lt.s32.totalorder %s196, 3
        %s198 = scalar_select %p197, %s196, 3
        %p199 = scmp.lt.s32.totalorder %s23, 0
        %s200 = scalar_select %p199, %s23, 0
        %s201 = sadd.s32 %s200, %s198
        %s202 = smul.addr %s201, 8
        %s203 = scalar_lea.vmem %s0, %s202
        %s204 = smul.u32 %s21, 2
        %s205 = sadd.s32 %s204, %s22
        %s206 = smul.u32 %s21, 2
        %s207 = sadd.s32 %s206, %s22
        %p208 = scmp.lt.s32.totalorder %s207, 3
        %s209 = scalar_select %p208, %s207, 3
        %s210 = smul.addr %s209, 8
        %s211 = scalar_lea.vmem %s1, %s210
        %s212 = smul.u32 %s21, 2
        %s213 = sadd.s32 %s212, %s22
        %p214 = scmp.eq.s32.totalorder %s22, 0
        %p215 = scmp.eq.s32.totalorder %s23, 0
        %p216 = pnand %p214, %p215
        %p217 = pneg %p216
        // Predicated region
        $region29: #{tpu_custom_call.1} parent=27 // pred_check
          _
        $region30: #{tpu_custom_call.1} parent=27 // pred_check_branch
          %219 = sbr.rel (%p216) target = $region32
        $region31: #{tpu_custom_call.1} parent=27 // pred_region
          %vm220 = vcmask 7168
          %221 = vst.msk [vmem:[#allocation2] sm:$0xff] %vm220, 0.0
        $region32: #{tpu_custom_call.1} parent=27 // pred_fallthru
          _
        %v222 = vld [vmem:[%s203] sm:$0xff]
        %v223 = vld [vmem:[%s211] sm:$0xff]
        %s224 = smul.u32 %s23, 32
        %v225 = vlaneseq
        %v226 = vand.u32 %v225, 127
        %v227 = vstv %s224
        %v228 = vadd.s32 %v227, %v226
        %229 = vset.pattern.permute.xlu0 0
        %230 = vperm.xlu0 %229, %v223
        %v231 = vpop.permute.xlu0 %230
        %vm232 = vcmp.eq.s32.totalorder %v228, %v231
        %v233 = vsel %vm232, 0.9, 0.0033333334
        %vm234 = vcmp.eq.s32.totalorder %v228, 0
        %v235 = vsel %vm234, 0.0, %v233
        %v236 = vmul.f32 %v235, %v222
        %vm237 = vcmask 261120
        %v238 = vsel %vm237, %v236, 0.0
        %239 = vadd.xlane.f32.xlu0 %v238
        %v240 = vpop.xlane.xlu0 %239
        %vm241 = vcmp.ne.s32.totalorder %v223, 0
        %s242 = smul.u32 %s21, 2
        %s243 = sadd.s32 %s242, %s22
        %s244 = smul.u32 %s243, 8
        %v245 = vlaneseq
        %v246 = vshrl.u32 %v245, 7
        %v247 = vstv %s244
        %v248 = vadd.s32 %v247, %v246
        %vm249 = vcmp.lt.s32.totalorder %v248, 28
        %vm250 = vmand %vm241, %vm249
        %s251 = scalar_select %p215, -0.66520274, 0.0
        %v252 = vld [vmem:[#allocation2] sm:$0xff]
        %v253 = vstv %s251
        %v254 = vsub.f32 %v253, %v240
        %v255 = vsel %vm250, %v254, 0.0
        %v256 = vadd.f32 %v252, %v255
        %vm257 = vcmask 7168
        %258 = vst.msk [vmem:[#allocation2] sm:$0xff] %vm257, %v256
        %p259 = scmp.eq.s32.totalorder %s22, 1
        %p260 = pnand %p259, %p215
        %p261 = pneg %p260
        // Predicated region
        $region33: #{tpu_custom_call.1} parent=27 // pred_check
          _
        $region34: #{tpu_custom_call.1} parent=27 // pred_check_branch
          %263 = sbr.rel (%p260) target = $region36
        $region35: #{tpu_custom_call.1} parent=27 // pred_region
          %v264 = vld [vmem:[#allocation2] sm:$0xff]
          %v265 = vsel %vm257, %v264, 0.0
          %266 = vadd.xlane.f32.xlu0 %v265
          %v267 = vpop.xlane.xlu0 %266
          %v268 = vrot.slane %v267, 4
          %v269 = vadd.f32 %v267, %v268
          %v270 = vrot.slane %v269, 2
          %v271 = vadd.f32 %v269, %v270
          %v272 = vrot.slane %v271, 1
          %v273 = vadd.f32 %v271, %v272
          %s274 = vtos %v273
          %v275 = vstv %s274
          %276 = vst [vmem:[%s194] sm:$0xff] %v275
        $region36: #{tpu_custom_call.1} parent=27 // pred_fallthru
          _
        %s277 = sand.u32 %s105, 1
        %s278 = scalar_lea.sflag [#allocation4], %s277
        %s279 = sand.u32 %s105, 1
        %s280 = smul.addr %s279, 8
        %s281 = scalar_lea.vmem [#allocation3], %s280
        // Predicated region
        $region37: #{tpu_custom_call.1} parent=27 // pred_check
          %p282 = pneg %p115
        $region38: #{tpu_custom_call.1} parent=27 // pred_check_branch
          %284 = sbr.rel (%p282) target = $region40
        $region39: #{tpu_custom_call.1} parent=27 // pred_region
          %s286 = ssub.s32 128, 128
          %287 = vsyncadd %s278, %s286
          %s288 = smul.addr %s21, 128
          %s289 = scalar_lea.hbm %s2, %s288
          %s291 = sshll.u32 %s281, 4
          %s292 = int_to_ptr.vmem [resolvable:$true] %s291
          %294 = dma.vmem_to_hbm [thread:$0]  %s292, 128, %s289, %s278
        $region40: #{tpu_custom_call.1} parent=27 // pred_fallthru
          _
      $region28: #{tpu_custom_call.1} parent=5 // pred_fallthru
        _
      %p295 = scmp.le.s32.totalorder 2, %s11
      // Predicated region
      $region41: #{tpu_custom_call.1} parent=5 // pred_check
        %p296 = pneg %p295
      $region42: #{tpu_custom_call.1} parent=5 // pred_check_branch
        %298 = sbr.rel (%p296) target = $region44
      $region43: #{tpu_custom_call.1} parent=5 // pred_region
        %s299 = ssub.s32 %s11, 2
        // Predicated region
        $region45: #{tpu_custom_call.1} parent=43 // pred_check
          %p300 = pneg %p121
        $region46: #{tpu_custom_call.1} parent=43 // pred_check_branch
          %302 = sbr.rel (%p300) target = $region48
        $region47: #{tpu_custom_call.1} parent=43 // pred_region
          %s303 = sand.u32 %s106, 1
          %s304 = scalar_lea.sflag [#allocation4], %s303
          %s305 = sand.u32 %s106, 1
          %s306 = smul.addr %s305, 8
          %s307 = scalar_lea.vmem [#allocation3], %s306
          %308 = dma.done %s304, 128
        $region48: #{tpu_custom_call.1} parent=43 // pred_fallthru
          _
      $region44: #{tpu_custom_call.1} parent=5 // pred_fallthru
        _
    $region6: #{tpu_custom_call.1} parent=1 // loop_footer
      %s15 = sadd.s32 1, %s11
    $region7: #{tpu_custom_call.1} parent=1 // loop_footer_branch
      %10 = sbr.rel target = $region3
    $region8: #{tpu_custom_call.1} parent=1 // loop_exit
      _
    %309 = vsyncpa [#allocation4], 1
    %s310 = scalar_lea.sflag [#allocation4], 1
    %311 = vsyncpa %s310, 1

</llo_original>
